<compile_context>
chip_gen: v7x
topology: tpu7x:2x2x1
jax: 0.10.0
libtpu: 0.0.40
codegen_flags: <defaults>
</compile_context>

<pallas_src>
import functools

import jax
import jax.numpy as jnp
from jax.experimental import pallas as pl
from jax.experimental.pallas import tpu as pltpu


def _label_smoothing_kernel(x_ref, t_ref, out_ref, *, confidence, smoothing,
                            n_rows):
    # x_ref: (TILE_N, C) logits (input dtype), t_ref: (TILE_N, 1) int32,
    # out_ref: (1, 1, 1) f32 per-block partial sum of row losses.
    tile_n, c = x_ref.shape
    x = x_ref[...].astype(jnp.float32)                      # (TILE_N, C)
    t = t_ref[...]                                          # (TILE_N, 1)

    # Row-wise max-shifted log-sum-exp; (x - m) lives only as the exp arg.
    m = jnp.max(x, axis=-1, keepdims=True)                  # (TILE_N, 1)
    lse = m + jnp.log(jnp.sum(jnp.exp(x - m), axis=-1, keepdims=True))

    # Folded loss (uses confidence + smoothing == 1):
    #   loss_row = lse - sum_j w_j * x_j,
    #   w_j = smoothing/C + confidence * (j == target)
    # One weighted reduction replaces the separate one-hot gather and sum(x).
    base = smoothing / c
    cls_idx = jax.lax.broadcasted_iota(jnp.int32, (tile_n, c), 1)
    w = jnp.where(cls_idx == t, base + confidence, base)    # (TILE_N, C)
    wx = jnp.sum(w * x, axis=-1, keepdims=True)             # (TILE_N, 1)
    loss_rows = lse - wx                                    # (TILE_N, 1)

    # Mask rows past the true batch size (only emitted for ragged grids).
    if n_rows % tile_n != 0:
        row = (jax.lax.broadcasted_iota(jnp.int32, (tile_n, 1), 0)
               + pl.program_id(0) * tile_n)
        loss_rows = jnp.where(row < n_rows, loss_rows, 0.0)

    out_ref[...] = jnp.sum(loss_rows).reshape(1, 1, 1)


def _round_up(x, m):
    return ((x + m - 1) // m) * m


def _vmem_capacity_bytes(default=64 * 1024 * 1024):
    """Physical VMEM per TensorCore; conservative 64 MiB fallback (v7x-safe)."""
    try:
        return int(pltpu.get_tpu_info().vmem_capacity_bytes)
    except Exception:
        return default


def _bytes_per_row(c, in_itemsize):
    """Estimated VMEM bytes per batch row, lane padding (128) included."""
    c_lanes = _round_up(max(int(c), 1), 128)
    return (2 * c_lanes * in_itemsize   # streamed logits, double-buffered
            + 3 * c_lanes * 4           # in-kernel full-width f32 temps
            + 2 * 128 * 4               # int32 target block (lane-padded), x2 buffers
            + 4 * 128 * 4)              # per-row f32 columns (m, lse, w*x, loss)


def _pick_tile_n(n, c, in_itemsize, budget_bytes, sublane):
    """Largest batch tile whose full VMEM working set fits the budget."""
    tile = budget_bytes // _bytes_per_row(c, in_itemsize)
    if tile >= n:
        return n                              # full batch dim is always legal
    return max(sublane, (tile // sublane) * sublane)


def label_smoothing_loss(x, target, smoothing=0.1, max_tile_n=None):
    """Pallas equivalent of LabelSmoothing.forward(x, target).

    x: (N, C) logits (f32 or bf16 -- streamed in its own dtype),
    target: (N,) integer class indices.  Returns a scalar f32 loss.
    """
    n, c = x.shape
    t2 = target.astype(jnp.int32).reshape(n, 1)

    itemsize = jnp.dtype(x.dtype).itemsize
    sublane = max(8, 32 // itemsize)          # 8 for f32, 16 for bf16

    vmem_cap = _vmem_capacity_bytes()
    headroom = 16 * 1024 * 1024
    # Per-tile working-set budget: large enough to stream multi-MiB logits
    # tiles (HBM roofline on v5e/v6e), small enough to fit v7x's 64 MiB.
    tile_budget = max(4 * 1024 * 1024,
                      min(32 * 1024 * 1024, (vmem_cap - headroom) // 2))

    tile_n = _pick_tile_n(n, c, itemsize, tile_budget, sublane)

    # Keep >= 2 grid blocks whenever possible so the "parallel" batch axis can
    # feed both TensorCores on v7x (harmless on single-TC chips).
    if n >= 2 * sublane:
        tile_n = min(tile_n, _round_up(pl.cdiv(n, 2), sublane))
    if max_tile_n is not None:
        tile_n = min(tile_n, int(max_tile_n))

    # Block-shape legality: second-to-last dim must be a multiple of the
    # dtype's sublane tile or equal to the full batch dim.
    if tile_n >= n:
        tile_n = n
    else:
        tile_n = max(sublane, (tile_n // sublane) * sublane)
        if tile_n >= n:
            tile_n = n
    num_blocks = pl.cdiv(n, tile_n)

    working_set = tile_n * _bytes_per_row(c, itemsize)
    vmem_limit = int(max(16 * 1024 * 1024,
                         min(vmem_cap - headroom, 2 * working_set)))

    kernel = functools.partial(
        _label_smoothing_kernel,
        confidence=1.0 - smoothing,
        smoothing=smoothing,
        n_rows=n,
    )

    cost = pl.CostEstimate(
        flops=8 * n * c,
        transcendentals=n * c + n,
        bytes_accessed=n * c * itemsize + n * 4 + num_blocks * 4,
    )

    partials = pl.pallas_call(
        kernel,
        out_shape=jax.ShapeDtypeStruct((num_blocks, 1, 1), jnp.float32),
        grid=(num_blocks,),
        in_specs=[
            pl.BlockSpec((tile_n, c), lambda i: (i, 0)),    # logits tile
            pl.BlockSpec((tile_n, 1), lambda i: (i, 0)),    # target tile
        ],
        out_specs=pl.BlockSpec((1, 1, 1), lambda i: (i, 0, 0)),
        compiler_params=pltpu.CompilerParams(
            dimension_semantics=("parallel",),
            vmem_limit_bytes=vmem_limit,
        ),
        cost_estimate=cost,
    )(x, t2)

    # Final mean: divide by N exactly once (partials are per-block SUMs).
    return jnp.sum(partials) / n


def _reference(x, target, smoothing=0.1):
    logprobs = jax.nn.log_softmax(x.astype(jnp.float32), axis=-1)
    nll = -jnp.take_along_axis(
        logprobs, target[:, None].astype(jnp.int32), axis=-1)[:, 0]
    smooth = -jnp.mean(logprobs, axis=-1)
    return jnp.mean((1.0 - smoothing) * nll + smoothing * smooth)


if __name__ == "__main__":
    key = jax.random.PRNGKey(0)
    kx, kt = jax.random.split(key)

    # Small classifier-head shapes (CIFAR-10 style): batch=36, classes=10.
    N, C = 36, 10
    x = jax.random.normal(kx, (N, C), dtype=jnp.float32)
    target = jax.random.randint(kt, (N,), 0, C, dtype=jnp.int32)
    ref = _reference(x, target, smoothing=0.1)

    # Auto-picked tiling (>= 2 blocks, ragged masked last block).
    loss = jax.block_until_ready(label_smoothing_loss(x, target, smoothing=0.1))
    assert jnp.allclose(loss, ref, rtol=1e-5, atol=1e-5), (loss, ref)

    # Forced tile_n=16 -> 3-block grid exercising the masked last block.
    loss2 = jax.block_until_ready(
        label_smoothing_loss(x, target, smoothing=0.1, max_tile_n=16))
    assert jnp.allclose(loss2, ref, rtol=1e-5, atol=1e-5), (loss2, ref)

    # bf16 logits: streamed as bf16 over HBM, cast to f32 only in the kernel.
    xb = x.astype(jnp.bfloat16)
    loss_b = jax.block_until_ready(label_smoothing_loss(xb, target, smoothing=0.1))
    ref_b = _reference(xb, target, smoothing=0.1)
    assert jnp.allclose(loss_b, ref_b, rtol=1e-4, atol=1e-4), (loss_b, ref_b)

    print("KERNEL_OK")
</pallas_src>

<mosaic_0001>
module attributes {stable_mosaic.version = 11 : i64} {
  func.func @_label_smoothing_kernel(%arg0: i32, %arg1: memref<24x10xf32, #tpu.memory_space<vmem>>, %arg2: memref<24x1xi32, #tpu.memory_space<vmem>>, %arg3: memref<1x1x1xf32, #tpu.memory_space<vmem>>) attributes {dimension_semantics = [#tpu.dimension_semantics<parallel>], iteration_bounds = array<i64: 2>, scalar_prefetch = 0 : i64, scratch_operands = 0 : i64, tpu.core_type = #tpu.core_type<tc>, window_params = [{transform_indices = @transform_0, window_bounds = array<i64: 24, 10>}, {transform_indices = @transform_1, window_bounds = array<i64: 24, 1>}, {transform_indices = @transform_2, window_bounds = array<i64: 1, 1, 1>}]} {
    %c0 = arith.constant 0 : index
    %c0_0 = arith.constant 0 : index
    %0 = vector.load %arg1[%c0, %c0_0] : memref<24x10xf32, #tpu.memory_space<vmem>>, vector<24x10xf32>
    %c0_1 = arith.constant 0 : index
    %c0_2 = arith.constant 0 : index
    %1 = vector.load %arg2[%c0_1, %c0_2] : memref<24x1xi32, #tpu.memory_space<vmem>>, vector<24x1xi32>
    %cst = arith.constant dense<0xFF800000> : vector<24xf32>
    %2 = vector.multi_reduction <maximumf>, %0, %cst [1] : vector<24x10xf32> to vector<24xf32>
    %3 = vector.shape_cast %2 : vector<24xf32> to vector<24x1xf32>
    %4 = vector.broadcast %3 : vector<24x1xf32> to vector<24x10xf32>
    %5 = arith.subf %0, %4 : vector<24x10xf32>
    %6 = math.exp %5 : vector<24x10xf32>
    %cst_3 = arith.constant dense<0.000000e+00> : vector<24xf32>
    %7 = vector.multi_reduction <add>, %6, %cst_3 [1] : vector<24x10xf32> to vector<24xf32>
    %8 = vector.shape_cast %7 : vector<24xf32> to vector<24x1xf32>
    %9 = math.log %8 : vector<24x1xf32>
    %10 = arith.addf %3, %9 : vector<24x1xf32>
    %11 = tpu.iota {dimensions = array<i32: 1>} : vector<24x10xi32>
    %12 = vector.broadcast %1 : vector<24x1xi32> to vector<24x10xi32>
    %13 = arith.cmpi eq, %11, %12 : vector<24x10xi32>
    %cst_4 = arith.constant 9.100000e-01 : f32
    %cst_5 = arith.constant 0.00999999977 : f32
    %14 = vector.broadcast %cst_4 : f32 to vector<24x10xf32>
    %15 = vector.broadcast %cst_5 : f32 to vector<24x10xf32>
    %16 = arith.select %13, %14, %15 : vector<24x10xi1>, vector<24x10xf32>
    %17 = arith.mulf %16, %0 : vector<24x10xf32>
    %cst_6 = arith.constant dense<0.000000e+00> : vector<24xf32>
    %18 = vector.multi_reduction <add>, %17, %cst_6 [1] : vector<24x10xf32> to vector<24xf32>
    %19 = vector.shape_cast %18 : vector<24xf32> to vector<24x1xf32>
    %20 = arith.subf %10, %19 : vector<24x1xf32>
    %21 = tpu.iota {dimensions = array<i32: 0>} : vector<24x1xi32>
    %c24_i32 = arith.constant 24 : i32
    %22 = arith.muli %arg0, %c24_i32 : i32
    %23 = vector.broadcast %22 : i32 to vector<24x1xi32>
    %24 = arith.addi %21, %23 : vector<24x1xi32>
    %c36_i32 = arith.constant 36 : i32
    %25 = vector.broadcast %c36_i32 : i32 to vector<24x1xi32>
    %26 = arith.cmpi slt, %24, %25 : vector<24x1xi32>
    %cst_7 = arith.constant 0.000000e+00 : f32
    %27 = vector.broadcast %cst_7 : f32 to vector<24x1xf32>
    %28 = arith.select %26, %20, %27 : vector<24x1xi1>, vector<24x1xf32>
    %29 = vector.shape_cast %28 : vector<24x1xf32> to vector<1x24x1xf32>
    %cst_8 = arith.constant dense<0.000000e+00> : vector<1xf32>
    %30 = vector.multi_reduction <add>, %29, %cst_8 [1, 2] : vector<1x24x1xf32> to vector<1xf32>
    %31 = vector.shape_cast %30 : vector<1xf32> to vector<1x1x1xf32>
    %32 = vector.extract %31[0, 0, 0] : f32 from vector<1x1x1xf32>
    %33 = vector.broadcast %32 : f32 to vector<1x1x1xf32>
    %c0_9 = arith.constant 0 : index
    %c0_10 = arith.constant 0 : index
    %c0_11 = arith.constant 0 : index
    %34 = vector.load %arg3[%c0_9, %c0_10, %c0_11] : memref<1x1x1xf32, #tpu.memory_space<vmem>>, vector<1x1x1xf32>
    tpu.vector_store %arg3[%c0_9, %c0_10, %c0_11], %33 {strides = array<i32>} : memref<1x1x1xf32, #tpu.memory_space<vmem>>, vector<1x1x1xf32>,
    return
  }
  func.func @transform_0(%arg0: i32) -> (i32, i32) {
    %c0_i32 = arith.constant 0 : i32
    %c0_i32_0 = arith.constant 0 : i32
    return %arg0, %c0_i32 : i32, i32
  }
  func.func @transform_1(%arg0: i32) -> (i32, i32) {
    %c0_i32 = arith.constant 0 : i32
    %c0_i32_0 = arith.constant 0 : i32
    return %arg0, %c0_i32 : i32, i32
  }
  func.func @transform_2(%arg0: i32) -> (i32, i32, i32) {
    %c0_i32 = arith.constant 0 : i32
    %c0_i32_0 = arith.constant 0 : i32
    %c0_i32_1 = arith.constant 0 : i32
    return %arg0, %c0_i32, %c0_i32_0 : i32, i32, i32
  }
}

</mosaic_0001>

<llo_original>
// kernel: tpu_custom_call.1
$region0: #{tpu_custom_call.1}
  #allocation0 [shape = 'u32[]', space=smem, size = 0x4, offset = 0x4, fixed_abs, tag = 'smem constant byte address 0x4 - core index']
  #allocation1 [shape = 'u32[144,128]{1,0:T(1,128)}', space=vmem, size = 0x12000, scoped, tag = 'internal scratch']
  %s0 = inlined_call_operand.vmem [shape: f32[36,10], index: 0, kind: input, shape index: {}]
  %s1 = inlined_call_operand.vmem [shape: s32[36,1], index: 1, kind: input, shape index: {}]
  %s2 = inlined_call_operand.vmem [shape: f32[2,1,1], index: 2, kind: output, shape index: {}]
  %s3 = sld [smem:[#allocation0]]
  $region41: #{tpu_custom_call.1} parent=0
    _
  %s5 = ssub.s32 1, %s3
  %s6 = scalar_select 0, %s5, %s3
  loop: start=0, step=1, limit=4
  $region2: #{tpu_custom_call.1} parent=0 // loop_pre_header
    _
  $region3: #{tpu_custom_call.1} parent=0 // loop_header
    %s8 = sphi 0, %s12
    %p9 = scmp.ge.s32.totalorder %s8, 4
    %s18 = sphi 0, %s20
    %s21 = sphi 0, %s18
    %s22 = sphi 0, %s21
    %s38 = sphi 0, %s22
    %s44 = sphi 0, %s46
    %s47 = sphi 0, %s44
    %s48 = sphi 0, %s47
    %s64 = sphi 0, %s48
    %s70 = sphi 0, %s72
    %s73 = sphi 0, %s70
    %s74 = sphi 0, %s73
    %s90 = sphi 0, %s74
  $region4: #{tpu_custom_call.1} parent=0 // loop_header_branch
    %11 = sbr.rel (%p9) target = $region8
  $region5: #{tpu_custom_call.1} parent=0 // loop_body
    %s13 = ssub.s32 %s8, 1
    %s14 = ssub.s32 %s8, 2
    %s15 = sadd.s32 %s8, 1
    %s16 = ssub.s32 %s8, %s15
    %p17 = scmp.eq.s32.totalorder %s16, 0
    %s19 = sadd.s32 %s18, 1
    %s20 = scalar_select %p17, %s18, %s19
    %p23 = pneg %p17
    %p24 = scmp.eq.s32.totalorder %s8, 1
    %p25 = por %p23, %p24
    %p26 = scmp.ne.s32.totalorder %s18, %s21
    %p27 = scmp.eq.s32.totalorder %s8, 0
    %p28 = por %p26, %p27
    %p29 = scmp.ne.s32.totalorder %s18, %s21
    %p30 = scmp.eq.s32.totalorder %s13, 1
    %p31 = por %p29, %p30
    %p32 = scmp.ne.s32.totalorder %s21, %s22
    %p33 = scmp.eq.s32.totalorder %s13, 0
    %p34 = por %p32, %p33
    %p35 = scmp.ne.s32.totalorder %s21, %s22
    %p36 = scmp.eq.s32.totalorder %s14, 1
    %p37 = por %p35, %p36
    %p39 = scmp.ne.s32.totalorder %s22, %s38
    %p40 = scmp.eq.s32.totalorder %s14, 0
    %p41 = por %p39, %p40
    %s42 = ssub.s32 %s8, %s15
    %p43 = scmp.eq.s32.totalorder %s42, 0
    %s45 = sadd.s32 %s44, 1
    %s46 = scalar_select %p43, %s44, %s45
    %p49 = pneg %p43
    %p50 = scmp.eq.s32.totalorder %s8, 1
    %p51 = por %p49, %p50
    %p52 = scmp.ne.s32.totalorder %s44, %s47
    %p53 = scmp.eq.s32.totalorder %s8, 0
    %p54 = por %p52, %p53
    %p55 = scmp.ne.s32.totalorder %s44, %s47
    %p56 = scmp.eq.s32.totalorder %s13, 1
    %p57 = por %p55, %p56
    %p58 = scmp.ne.s32.totalorder %s47, %s48
    %p59 = scmp.eq.s32.totalorder %s13, 0
    %p60 = por %p58, %p59
    %p61 = scmp.ne.s32.totalorder %s47, %s48
    %p62 = scmp.eq.s32.totalorder %s14, 1
    %p63 = por %p61, %p62
    %p65 = scmp.ne.s32.totalorder %s48, %s64
    %p66 = scmp.eq.s32.totalorder %s14, 0
    %p67 = por %p65, %p66
    %s68 = ssub.s32 %s8, %s15
    %p69 = scmp.eq.s32.totalorder %s68, 0
    %s71 = sadd.s32 %s70, 1
    %s72 = scalar_select %p69, %s70, %s71
    %p75 = pneg %p69
    %p76 = scmp.eq.s32.totalorder %s8, 1
    %p77 = por %p75, %p76
    %p78 = scmp.ne.s32.totalorder %s70, %s73
    %p79 = scmp.eq.s32.totalorder %s8, 0
    %p80 = por %p78, %p79
    %p81 = scmp.ne.s32.totalorder %s70, %s73
    %p82 = scmp.eq.s32.totalorder %s13, 1
    %p83 = por %p81, %p82
    %p84 = scmp.ne.s32.totalorder %s73, %s74
    %p85 = scmp.eq.s32.totalorder %s13, 0
    %p86 = por %p84, %p85
    %p87 = scmp.ne.s32.totalorder %s73, %s74
    %p88 = scmp.eq.s32.totalorder %s14, 1
    %p89 = por %p87, %p88
    %p91 = scmp.ne.s32.totalorder %s74, %s90
    %p92 = scmp.eq.s32.totalorder %s14, 0
    %p93 = por %p91, %p92
    %p94 = scmp.le.s32.totalorder 1, %s8
    %p95 = scmp.lt.s32.totalorder %s8, 3
    %p96 = pnand %p94, %p95
    %p97 = pneg %p96
    // Predicated region
    $region9: #{tpu_custom_call.1} parent=5 // pred_check
      _
    $region10: #{tpu_custom_call.1} parent=5 // pred_check_branch
      %99 = sbr.rel (%p96) target = $region12
    $region11: #{tpu_custom_call.1} parent=5 // pred_region
      %s100 = ssub.s32 %s8, 1
    $region12: #{tpu_custom_call.1} parent=5 // pred_fallthru
      _
    %p101 = scmp.lt.s32.totalorder %s8, 2
    // Predicated region
    $region13: #{tpu_custom_call.1} parent=5 // pred_check
      %p102 = pneg %p101
    $region14: #{tpu_custom_call.1} parent=5 // pred_check_branch
      %104 = sbr.rel (%p102) target = $region16
    $region15: #{tpu_custom_call.1} parent=5 // pred_region
      // Predicated region
      $region17: #{tpu_custom_call.1} parent=15 // pred_check
        %p105 = pneg %p28
      $region18: #{tpu_custom_call.1} parent=15 // pred_check_branch
        %107 = sbr.rel (%p105) target = $region20
      $region19: #{tpu_custom_call.1} parent=15 // pred_region
        %s108 = smul.u32 3, %s8
        %s109 = ssub.s32 5, %s108
        %p110 = scmp.lt.s32.totalorder %s109, 3
        %s111 = scalar_select %p110, %s109, 3
        %s112 = smul.u32 128, %s111
        %p113 = scmp.lt.s32.totalorder %s108, 4
        %s114 = scalar_select %p113, %s108, 4
        %s115 = smul.addr %s114, 8
        %s116 = scalar_lea.vmem %s0, %s115
        %s117 = smul.u32 3, %s8
        %s118 = ssub.s32 5, %s117
        %p119 = scmp.lt.s32.totalorder %s118, 3
        %s120 = scalar_select %p119, %s118, 3
        %s121 = smul.u32 128, %s120
      $region20: #{tpu_custom_call.1} parent=15 // pred_fallthru
        _
      // Predicated region
      $region21: #{tpu_custom_call.1} parent=15 // pred_check
        %p122 = pneg %p54
      $region22: #{tpu_custom_call.1} parent=15 // pred_check_branch
        %124 = sbr.rel (%p122) target = $region24
      $region23: #{tpu_custom_call.1} parent=15 // pred_region
        %s125 = smul.u32 3, %s8
        %s126 = ssub.s32 5, %s125
        %p127 = scmp.lt.s32.totalorder %s126, 3
        %s128 = scalar_select %p127, %s126, 3
        %s129 = smul.u32 128, %s128
        %p130 = scmp.lt.s32.totalorder %s125, 4
        %s131 = scalar_select %p130, %s125, 4
        %s132 = smul.addr %s131, 8
        %s133 = scalar_lea.vmem %s1, %s132
        %s134 = smul.u32 3, %s8
        %s135 = ssub.s32 5, %s134
        %p136 = scmp.lt.s32.totalorder %s135, 3
        %s137 = scalar_select %p136, %s135, 3
        %s138 = smul.u32 128, %s137
      $region24: #{tpu_custom_call.1} parent=15 // pred_fallthru
        _
    $region16: #{tpu_custom_call.1} parent=5 // pred_fallthru
      _
    %p139 = scmp.le.s32.totalorder 1, %s8
    %p140 = scmp.lt.s32.totalorder %s8, 3
    %p141 = pnand %p139, %p140
    %p142 = pneg %p141
    // Predicated region
    $region25: #{tpu_custom_call.1} parent=5 // pred_check
      _
    $region26: #{tpu_custom_call.1} parent=5 // pred_check_branch
      %144 = sbr.rel (%p141) target = $region28
    $region27: #{tpu_custom_call.1} parent=5 // pred_region
      %s145 = ssub.s32 %s8, 1
      %s146 = smul.u32 3, %s13
      %s147 = ssub.s32 5, %s146
      %p148 = scmp.lt.s32.totalorder %s147, 3
      %s149 = scalar_select %p148, %s147, 3
      %s150 = smul.u32 128, %s149
      %p151 = scmp.lt.s32.totalorder %s146, 4
      %s152 = scalar_select %p151, %s146, 4
      %s153 = smul.addr %s152, 8
      %s154 = scalar_lea.vmem %s0, %s153
      %p155 = pneg %p34
      %p156 = pneg %p31
      %s157 = smul.u32 3, %s13
      %s158 = ssub.s32 5, %s157
      %p159 = scmp.lt.s32.totalorder %s158, 3
      %s160 = scalar_select %p159, %s158, 3
      %s161 = smul.u32 128, %s160
      %p162 = scmp.lt.s32.totalorder %s157, 4
      %s163 = scalar_select %p162, %s157, 4
      %s164 = smul.addr %s163, 8
      %s165 = scalar_lea.vmem %s1, %s164
      %p166 = pneg %p60
      %p167 = pneg %p57
      %p168 = pneg %p86
      %p169 = pneg %p83
      %p170 = scmp.lt.s32.totalorder %s13, 1
      %s171 = scalar_select %p170, %s13, 1
      %s172 = scalar_lea.vmem %s2, %s171
      %s173 = smul.u32 3, %s13
      %s174 = ssub.s32 5, %s173
      %p175 = scmp.lt.s32.totalorder %s174, 3
      %s176 = scalar_select %p175, %s174, 3
      %s177 = smul.u32 128, %s176
      %p178 = scmp.lt.s32.totalorder %s173, 4
      %s179 = scalar_select %p178, %s173, 4
      %s180 = smul.addr %s179, 8
      %s181 = scalar_lea.vmem %s0, %s180
      %s182 = smul.u32 3, %s13
      %s183 = ssub.s32 5, %s182
      %p184 = scmp.lt.s32.totalorder %s183, 3
      %s185 = scalar_select %p184, %s183, 3
      %s186 = smul.u32 128, %s185
      %s187 = smul.u32 3, %s13
      %s188 = ssub.s32 5, %s187
      %p189 = scmp.lt.s32.totalorder %s188, 3
      %s190 = scalar_select %p189, %s188, 3
      %s191 = smul.u32 128, %s190
      %p192 = scmp.lt.s32.totalorder %s187, 4
      %s193 = scalar_select %p192, %s187, 4
      %s194 = smul.addr %s193, 8
      %s195 = scalar_lea.vmem %s1, %s194
      %s196 = smul.u32 3, %s13
      %s197 = ssub.s32 5, %s196
      %p198 = scmp.lt.s32.totalorder %s197, 3
      %s199 = scalar_select %p198, %s197, 3
      %s200 = smul.u32 128, %s199
      %p201 = scmp.lt.s32.totalorder %s13, 1
      %s202 = scalar_select %p201, %s13, 1
      %s203 = scalar_lea.vmem %s2, %s202
      %v204 = vld [vmem:[%s181] sm:$0xff]
      %v205 = vld [vmem:[%s181 + $0x8] sm:$0xff]
      %v206 = vld [vmem:[%s181 + $0x10] sm:$0xff]
      %v207 = vld [vmem:[%s195] sm:$0xff]
      %v208 = vld [vmem:[%s195 + $0x8] sm:$0xff]
      %v209 = vld [vmem:[%s195 + $0x10] sm:$0xff]
      %vm210 = vcmask 80896
      %v211 = vsel %vm210, %v204, -inf
      %212 = vmax.xlane.f32.xlu0 %v211
      %v213 = vpop.xlane.xlu0 %212
      %v214 = vsel %vm210, %v205, -inf
      %215 = vmax.xlane.f32.xlu0 %v214
      %v216 = vpop.xlane.xlu0 %215
      %v217 = vsel %vm210, %v206, -inf
      %218 = vmax.xlane.f32.xlu0 %v217
      %v219 = vpop.xlane.xlu0 %218
      %v220 = vsub.f32 %v204, %v213
      %v221 = vsub.f32 %v205, %v216
      %v222 = vsub.f32 %v206, %v219
      %v223 = vmul.f32 %v220, 1.442695
      %v224 = vpow.pop %v223
      %v225 = vmul.f32 %v221, 1.442695
      %v226 = vpow.pop %v225
      %v227 = vmul.f32 %v222, 1.442695
      %v228 = vpow.pop %v227
      %v229 = vsel %vm210, %v224, 0.0
      %230 = vadd.xlane.f32.xlu0 %v229
      %v231 = vpop.xlane.xlu0 %230
      %v232 = vsel %vm210, %v226, 0.0
      %233 = vadd.xlane.f32.xlu0 %v232
      %v234 = vpop.xlane.xlu0 %233
      %v235 = vsel %vm210, %v228, 0.0
      %236 = vadd.xlane.f32.xlu0 %v235
      %v237 = vpop.xlane.xlu0 %236
      %v238 = vlog2.pop %v231
      %v239 = vmul.f32 %v238, 0.6931472
      %v240 = vlog2.pop %v234
      %v241 = vmul.f32 %v240, 0.6931472
      %v242 = vlog2.pop %v237
      %v243 = vmul.f32 %v242, 0.6931472
      %v244 = vadd.f32 %v213, %v239
      %v245 = vadd.f32 %v216, %v241
      %v246 = vadd.f32 %v219, %v243
      %v247 = vlaneseq
      %v248 = vand.u32 %v247, 127
      %249 = vset.pattern.permute.xlu0 0
      %250 = vperm.xlu0 %249, %v207
      %v251 = vpop.permute.xlu0 %250
      %252 = vset.pattern.permute.xlu0 0
      %253 = vperm.xlu0 %252, %v208
      %v254 = vpop.permute.xlu0 %253
      %255 = vset.pattern.permute.xlu0 0
      %256 = vperm.xlu0 %255, %v209
      %v257 = vpop.permute.xlu0 %256
      %vm258 = vcmp.eq.s32.totalorder %v248, %v251
      %vm259 = vcmp.eq.s32.totalorder %v248, %v254
      %vm260 = vcmp.eq.s32.totalorder %v248, %v257
      %v261 = vsel %vm258, 0.91, 0.01
      %v262 = vsel %vm259, 0.91, 0.01
      %v263 = vsel %vm260, 0.91, 0.01
      %v264 = vmul.f32 %v261, %v204
      %v265 = vmul.f32 %v262, %v205
      %v266 = vmul.f32 %v263, %v206
      %v267 = vsel %vm210, %v264, 0.0
      %268 = vadd.xlane.f32.xlu0 %v267
      %v269 = vpop.xlane.xlu0 %268
      %v270 = vsel %vm210, %v265, 0.0
      %271 = vadd.xlane.f32.xlu0 %v270
      %v272 = vpop.xlane.xlu0 %271
      %v273 = vsel %vm210, %v266, 0.0
      %274 = vadd.xlane.f32.xlu0 %v273
      %v275 = vpop.xlane.xlu0 %274
      %v276 = vsub.f32 %v244, %v269
      %v277 = vsub.f32 %v245, %v272
      %v278 = vsub.f32 %v246, %v275
      %v279 = vlaneseq
      %v280 = vshrl.u32 %v279, 7
      %v281 = vadd.s32 %v280, 8
      %v282 = vadd.s32 %v280, 16
      %s283 = smul.u32 %s13, 24
      %v284 = vstv %s283
      %v285 = vadd.s32 %v280, %v284
      %v286 = vadd.s32 %v281, %v284
      %v287 = vadd.s32 %v282, %v284
      %vm288 = vcmp.lt.s32.totalorder %v285, 36
      %vm289 = vcmp.lt.s32.totalorder %v286, 36
      %vm290 = vcmp.lt.s32.totalorder %v287, 36
      %v291 = vsel %vm288, %v276, 0.0
      %v292 = vsel %vm289, %v277, 0.0
      %v293 = vsel %vm290, %v278, 0.0
      %vm294 = vcmask 7168
      %v295 = vsel %vm294, %v291, 0.0
      %v296 = vsel %vm294, %v292, 0.0
      %v297 = vadd.f32 %v295, %v296
      %v298 = vsel %vm294, %v293, 0.0
      %v299 = vadd.f32 %v297, %v298
      %300 = vadd.xlane.f32.xlu0 %v299
      %v301 = vpop.xlane.xlu0 %300
      %v302 = vrot.slane %v301, 4
      %v303 = vadd.f32 %v301, %v302
      %v304 = vrot.slane %v303, 2
      %v305 = vadd.f32 %v303, %v304
      %v306 = vrot.slane %v305, 1
      %v307 = vadd.f32 %v305, %v306
      %s308 = vtos %v307
      %v309 = vstv %s308
      %vm310 = vcmask 0
      %311 = vst.msk [vmem:[%s203] sm:$0x1] %vm310, %v309
      %p312 = scmp.lt.s32.totalorder %s13, 1
      %s313 = scalar_select %p312, %s13, 1
      %s314 = scalar_lea.vmem %s2, %s313
      // Predicated region
      $region29: #{tpu_custom_call.1} parent=27 // pred_check
        %p315 = pneg %p83
      $region30: #{tpu_custom_call.1} parent=27 // pred_check_branch
        %317 = sbr.rel (%p315) target = $region32
      $region31: #{tpu_custom_call.1} parent=27 // pred_region
        _
      $region32: #{tpu_custom_call.1} parent=27 // pred_fallthru
        _
    $region28: #{tpu_custom_call.1} parent=5 // pred_fallthru
      _
    %p318 = scmp.le.s32.totalorder 2, %s8
    // Predicated region
    $region33: #{tpu_custom_call.1} parent=5 // pred_check
      %p319 = pneg %p318
    $region34: #{tpu_custom_call.1} parent=5 // pred_check_branch
      %321 = sbr.rel (%p319) target = $region36
    $region35: #{tpu_custom_call.1} parent=5 // pred_region
      %s322 = ssub.s32 %s8, 2
      // Predicated region
      $region37: #{tpu_custom_call.1} parent=35 // pred_check
        %p323 = pneg %p89
      $region38: #{tpu_custom_call.1} parent=35 // pred_check_branch
        %325 = sbr.rel (%p323) target = $region40
      $region39: #{tpu_custom_call.1} parent=35 // pred_region
        %p326 = scmp.lt.s32.totalorder %s14, 1
        %s327 = scalar_select %p326, %s14, 1
        %s328 = scalar_lea.vmem %s2, %s327
      $region40: #{tpu_custom_call.1} parent=35 // pred_fallthru
        _
    $region36: #{tpu_custom_call.1} parent=5 // pred_fallthru
      _
  $region6: #{tpu_custom_call.1} parent=0 // loop_footer
    %s12 = sadd.s32 1, %s8
  $region7: #{tpu_custom_call.1} parent=0 // loop_footer_branch
    %7 = sbr.rel target = $region3
  $region8: #{tpu_custom_call.1} parent=0 // loop_exit
    _

</llo_original>
